<compile_context>
chip_gen: v5e
topology: v5e:2x2
jax: 0.10.0
libtpu: 0.0.40
codegen_flags: <defaults>
</compile_context>

<pallas_src>
import math

import jax
import jax.numpy as jnp
from jax.experimental import pallas as pl
from jax.experimental.pallas import tpu as pltpu

_BN_EPS = 1e-5


def _stats_kernel(x_ref, w_ref, sum_ref, sq_ref):
    # x_ref:   (1, Cin, T)   one batch element, one HW tile (lane-dense T)
    # w_ref:   (Cout, Cin)
    # sum_ref: (1, 1, Cout, 1)  per-tile partial sum  of z over pixels
    # sq_ref:  (1, 1, Cout, 1)  per-tile partial sum  of z^2 over pixels
    z = jnp.dot(w_ref[...], x_ref[0], preferred_element_type=jnp.float32)  # (Cout, T)
    sum_ref[0, 0] = jnp.sum(z, axis=1, keepdims=True)
    sq_ref[0, 0] = jnp.sum(z * z, axis=1, keepdims=True)


def _apply_kernel(x_ref, w_ref, scale_ref, shift_ref, o_ref):
    # x_ref:     (1, Cin, T)
    # w_ref:     (Cout, Cin)
    # scale_ref: (Cout, 1)   gamma * rsqrt(var + eps)
    # shift_ref: (Cout, 1)   beta  - mean * scale
    # o_ref:     (1, Cout, T)
    z = jnp.dot(w_ref[...], x_ref[0], preferred_element_type=jnp.float32)  # (Cout, T)
    y = z * scale_ref[...] + shift_ref[...]
    o_ref[0] = jnp.maximum(y, 0.0).astype(o_ref.dtype)


def _choose_tile(hw, max_tile=2048):
    """Largest divisor of hw that is a multiple of 128 and <= max_tile, else hw.

    max_tile=2048 keeps (2x double-buffered x tile + 2x out tile) well under the
    v7x 32 MiB scoped-VMEM budget even for a few hundred channels.
    """
    if hw % 128 != 0 or hw <= max_tile:
        return hw
    t = max_tile
    while t >= 128:
        if hw % t == 0:
            return t
        t -= 128
    return hw


def kernel_calculate_forward(x_nchw, conv_w, conv_b, bn_gamma, bn_beta):
    """x_nchw: (N, Cin, H, W); conv_w: (Cout, Cin, 1, 1); conv_b/bn_*: (Cout,).

    conv_b is accepted for API parity but is not needed: in training-mode BN the
    per-channel conv bias cancels exactly under mean subtraction.
    """
    del conv_b  # cancelled by BN mean subtraction (and zero at init anyway)

    N, Cin, H, W = x_nchw.shape
    Cout = conv_w.shape[0]
    HW = H * W
    M = N * HW

    tile = _choose_tile(HW)
    n_t = HW // tile

    # Free reshapes only -- no HBM transpose passes.
    x3 = x_nchw.reshape(N, Cin, HW).astype(jnp.float32)
    w_mat = conv_w.reshape(Cout, Cin).astype(jnp.float32)

    parallel2 = pltpu.CompilerParams(dimension_semantics=("parallel", "parallel"))

    # ---- Phase 1: per-tile partial sums / sums-of-squares of z = W @ x ----
    part_sum, part_sq = pl.pallas_call(
        _stats_kernel,
        out_shape=(
            jax.ShapeDtypeStruct((N, n_t, Cout, 1), jnp.float32),
            jax.ShapeDtypeStruct((N, n_t, Cout, 1), jnp.float32),
        ),
        grid=(N, n_t),
        in_specs=[
            pl.BlockSpec((1, Cin, tile), lambda n, t: (n, 0, t)),
            pl.BlockSpec((Cout, Cin), lambda n, t: (0, 0)),
        ],
        out_specs=(
            pl.BlockSpec((1, 1, Cout, 1), lambda n, t: (n, t, 0, 0)),
            pl.BlockSpec((1, 1, Cout, 1), lambda n, t: (n, t, 0, 0)),
        ),
        compiler_params=parallel2,
    )(x3, w_mat)

    # Tiny cross-tile combine (O(N * n_t * Cout) floats) done outside the kernel.
    sum_z = jnp.sum(part_sum, axis=(0, 1, 3))  # (Cout,)
    sum_z2 = jnp.sum(part_sq, axis=(0, 1, 3))  # (Cout,)
    mean = sum_z / M
    var = jnp.maximum(sum_z2 / M - mean * mean, 0.0)  # biased (training-mode) variance

    # Fold BN affine into one per-channel scale/shift (applied to z = W @ x).
    scale = (bn_gamma.astype(jnp.float32) * jax.lax.rsqrt(var + _BN_EPS)).reshape(Cout, 1)
    shift = (bn_beta.astype(jnp.float32) - mean * scale[:, 0]).reshape(Cout, 1)

    # ---- Phase 2: fused conv + scale/shift + ReLU, lane-dense output ----
    out3 = pl.pallas_call(
        _apply_kernel,
        out_shape=jax.ShapeDtypeStruct((N, Cout, HW), jnp.float32),
        grid=(N, n_t),
        in_specs=[
            pl.BlockSpec((1, Cin, tile), lambda n, t: (n, 0, t)),
            pl.BlockSpec((Cout, Cin), lambda n, t: (0, 0)),
            pl.BlockSpec((Cout, 1), lambda n, t: (0, 0)),
            pl.BlockSpec((Cout, 1), lambda n, t: (0, 0)),
        ],
        out_specs=pl.BlockSpec((1, Cout, tile), lambda n, t: (n, 0, t)),
        compiler_params=parallel2,
    )(x3, w_mat, scale, shift)

    # Free reshape back to NCHW.
    return out3.reshape(N, Cout, H, W)


def init_params(key, in_channels, out_channels):
    """Deterministic init matching the module's init_weight().

    Conv2d weight: kaiming_normal_(a=1) -> std = 1/sqrt(fan_in), fan_in = Cin*1*1.
    Conv bias: 0. BatchNorm2d: gamma=1, beta=0.
    """
    std = 1.0 / math.sqrt(in_channels)
    conv_w = std * jax.random.normal(
        key, (out_channels, in_channels, 1, 1), dtype=jnp.float32
    )
    conv_b = jnp.zeros((out_channels,), dtype=jnp.float32)
    bn_gamma = jnp.ones((out_channels,), dtype=jnp.float32)
    bn_beta = jnp.zeros((out_channels,), dtype=jnp.float32)
    return conv_w, conv_b, bn_gamma, bn_beta


if __name__ == "__main__":
    N, Cin, H, W = 2, 4, 16, 16
    Cout = 8

    key = jax.random.PRNGKey(0)
    k_x, k_w = jax.random.split(key)

    x = jax.random.normal(k_x, (N, Cin, H, W), dtype=jnp.float32)
    conv_w, conv_b, bn_gamma, bn_beta = init_params(k_w, Cin, Cout)

    out = kernel_calculate_forward(x, conv_w, conv_b, bn_gamma, bn_beta)
    out = jax.block_until_ready(out)

    # Pure-JAX reference (training-mode BatchNorm with batch statistics).
    xf = jnp.transpose(x, (0, 2, 3, 1)).reshape(-1, Cin)
    y = xf @ conv_w.reshape(Cout, Cin).T + conv_b
    mu = jnp.mean(y, axis=0, keepdims=True)
    var = jnp.mean((y - mu) ** 2, axis=0, keepdims=True)
    ref = jnp.maximum((y - mu) / jnp.sqrt(var + _BN_EPS) * bn_gamma + bn_beta, 0.0)
    ref = jnp.transpose(ref.reshape(N, H, W, Cout), (0, 3, 1, 2))

    assert out.shape == (N, Cout, H, W)
    assert jnp.allclose(out, ref, atol=1e-5, rtol=1e-5)

    print("KERNEL_OK")
</pallas_src>

<mosaic_0001>
module attributes {stable_mosaic.version = 11 : i64} {
  func.func @_stats_kernel(%arg0: i32, %arg1: i32, %arg2: memref<1x4x256xf32, #tpu.memory_space<vmem>>, %arg3: memref<8x4xf32, #tpu.memory_space<vmem>>, %arg4: memref<1x1x8x1xf32, #tpu.memory_space<vmem>>, %arg5: memref<1x1x8x1xf32, #tpu.memory_space<vmem>>) attributes {dimension_semantics = [#tpu.dimension_semantics<parallel>, #tpu.dimension_semantics<parallel>], iteration_bounds = array<i64: 2, 1>, scalar_prefetch = 0 : i64, scratch_operands = 0 : i64, tpu.core_type = #tpu.core_type<tc>, window_params = [{transform_indices = @transform_0, window_bounds = array<i64: 1, 4, 256>}, {pipeline_mode = #tpu.pipeline_mode<synchronous>, transform_indices = @transform_1, window_bounds = array<i64: 8, 4>}, {transform_indices = @transform_2, window_bounds = array<i64: 1, 1, 8, 1>}, {transform_indices = @transform_3, window_bounds = array<i64: 1, 1, 8, 1>}]} {
    %c0 = arith.constant 0 : index
    %c0_0 = arith.constant 0 : index
    %0 = vector.load %arg3[%c0, %c0_0] : memref<8x4xf32, #tpu.memory_space<vmem>>, vector<8x4xf32>
    %c0_1 = arith.constant 0 : index
    %c0_2 = arith.constant 0 : index
    %c0_3 = arith.constant 0 : index
    %1 = vector.load %arg2[%c0_1, %c0_2, %c0_3] : memref<1x4x256xf32, #tpu.memory_space<vmem>>, vector<1x4x256xf32>
    %2 = vector.shape_cast %1 : vector<1x4x256xf32> to vector<4x256xf32>
    %cst = arith.constant dense<0.000000e+00> : vector<8x256xf32>
    %3 = tpu.matmul %0, %2, %cst {dimension_numbers = #tpu.dot_dimension_numbers<[1], [0], [0], [1], [0, 0, 1, 1], [], []>} : vector<8x4xf32>, vector<4x256xf32>, vector<8x256xf32> -> vector<8x256xf32>
    %cst_4 = arith.constant dense<0.000000e+00> : vector<8xf32>
    %4 = vector.multi_reduction <add>, %3, %cst_4 [1] : vector<8x256xf32> to vector<8xf32>
    %5 = vector.shape_cast %4 : vector<8xf32> to vector<8x1xf32>
    %c0_5 = arith.constant 0 : index
    %c0_6 = arith.constant 0 : index
    %c0_7 = arith.constant 0 : index
    %c0_8 = arith.constant 0 : index
    %6 = vector.load %arg4[%c0_5, %c0_6, %c0_7, %c0_8] : memref<1x1x8x1xf32, #tpu.memory_space<vmem>>, vector<1x1x8x1xf32>
    %7 = vector.shape_cast %6 : vector<1x1x8x1xf32> to vector<8x1xf32>
    %8 = vector.shape_cast %5 : vector<8x1xf32> to vector<1x1x8x1xf32>
    tpu.vector_store %arg4[%c0_5, %c0_6, %c0_7, %c0_8], %8 {strides = array<i32>} : memref<1x1x8x1xf32, #tpu.memory_space<vmem>>, vector<1x1x8x1xf32>,
    %9 = arith.mulf %3, %3 : vector<8x256xf32>
    %cst_9 = arith.constant dense<0.000000e+00> : vector<8xf32>
    %10 = vector.multi_reduction <add>, %9, %cst_9 [1] : vector<8x256xf32> to vector<8xf32>
    %11 = vector.shape_cast %10 : vector<8xf32> to vector<8x1xf32>
    %c0_10 = arith.constant 0 : index
    %c0_11 = arith.constant 0 : index
    %c0_12 = arith.constant 0 : index
    %c0_13 = arith.constant 0 : index
    %12 = vector.load %arg5[%c0_10, %c0_11, %c0_12, %c0_13] : memref<1x1x8x1xf32, #tpu.memory_space<vmem>>, vector<1x1x8x1xf32>
    %13 = vector.shape_cast %12 : vector<1x1x8x1xf32> to vector<8x1xf32>
    %14 = vector.shape_cast %11 : vector<8x1xf32> to vector<1x1x8x1xf32>
    tpu.vector_store %arg5[%c0_10, %c0_11, %c0_12, %c0_13], %14 {strides = array<i32>} : memref<1x1x8x1xf32, #tpu.memory_space<vmem>>, vector<1x1x8x1xf32>,
    return
  }
  func.func @transform_0(%arg0: i32, %arg1: i32) -> (i32, i32, i32) {
    %c0_i32 = arith.constant 0 : i32
    %c0_i32_0 = arith.constant 0 : i32
    return %arg0, %c0_i32, %arg1 : i32, i32, i32
  }
  func.func @transform_1(%arg0: i32, %arg1: i32) -> (i32, i32) {
    %c0_i32 = arith.constant 0 : i32
    %c0_i32_0 = arith.constant 0 : i32
    %c0_i32_1 = arith.constant 0 : i32
    return %c0_i32, %c0_i32_0 : i32, i32
  }
  func.func @transform_2(%arg0: i32, %arg1: i32) -> (i32, i32, i32, i32) {
    %c0_i32 = arith.constant 0 : i32
    %c0_i32_0 = arith.constant 0 : i32
    %c0_i32_1 = arith.constant 0 : i32
    return %arg0, %arg1, %c0_i32, %c0_i32_0 : i32, i32, i32, i32
  }
  func.func @transform_3(%arg0: i32, %arg1: i32) -> (i32, i32, i32, i32) {
    %c0_i32 = arith.constant 0 : i32
    %c0_i32_0 = arith.constant 0 : i32
    %c0_i32_1 = arith.constant 0 : i32
    return %arg0, %arg1, %c0_i32, %c0_i32_0 : i32, i32, i32, i32
  }
}

</mosaic_0001>

<llo_original>
// kernel: tpu_custom_call.1
$region0: #{tpu_custom_call.1}
  #allocation0 [shape = 'u32[]', space=smem, size = 0x4, offset = 0x4, fixed_abs, tag = 'smem constant byte address 0x4 - core index']
  #allocation1 [shape = 'u32[72,128]{1,0:T(1,128)}', space=vmem, size = 0x9000, scoped, tag = 'internal scratch']
  %s0 = inlined_call_operand.hbm [shape: f32[2,4,256], index: 0, kind: input, shape index: {}]
  %s1 = inlined_call_operand.vmem [shape: f32[8,4], index: 1, kind: input, shape index: {}]
  %s2 = inlined_call_operand.vmem [shape: f32[2,1,8,1], index: 2, kind: output, shape index: {0}]
  %s3 = inlined_call_operand.vmem [shape: f32[2,1,8,1], index: 3, kind: output, shape index: {1}]
  %4 = xla_tuple %s2, %s3
  %s5 = sld [smem:[#allocation0]]
  $region53: #{tpu_custom_call.1} parent=0
    _
  %s7 = ssub.s32 1, %s5
  %s8 = scalar_select 0, %s7, %s5
  $region1: #{tpu_custom_call.1} parent=0
    #allocation2 [shape = 'u8[8192]{0}', space=vmem, size = 0x2000, scoped, tag = 'input window, operand 0']
    #allocation3 [shape = 's32[2]{0}', space=sflag, size = 0x8, scoped, tag = 'scoped memory for tpu_custom_call.1']
    %9 = vsyncpa [#allocation3], 0
    %s10 = scalar_lea.sflag [#allocation3], 1
    %11 = vsyncpa %s10, 0
    loop: start=0, step=1, limit=4
    $region2: #{tpu_custom_call.1} parent=1 // loop_pre_header
      _
    $region3: #{tpu_custom_call.1} parent=1 // loop_header
      %s13 = sphi 0, %s17
      %p14 = scmp.ge.s32.totalorder %s13, 4
      %s20 = sphi 0, %s32
      %s21 = sphi 0, %s28
      %s22 = sphi 0, %s20
      %s23 = sphi 0, %s21
      %s24 = sphi 0, %s22
      %s25 = sphi 0, %s23
      %s37 = sphi 0, %s39
      %s40 = sphi 0, %s37
      %s41 = sphi 0, %s40
      %s57 = sphi 0, %s41
      %s61 = sphi 0, %s61
      %s63 = sphi 0, %s61
      %s64 = sphi 0, %s63
      %s78 = sphi 0, %s64
      %s86 = sphi 0, %s88
      %s89 = sphi 0, %s86
      %s90 = sphi 0, %s89
      %s106 = sphi 0, %s90
      %s114 = sphi 0, %s116
      %s117 = sphi 0, %s114
      %s118 = sphi 0, %s117
      %s134 = sphi 0, %s118
    $region4: #{tpu_custom_call.1} parent=1 // loop_header_branch
      %16 = sbr.rel (%p14) target = $region8
    $region5: #{tpu_custom_call.1} parent=1 // loop_body
      %s18 = ssub.s32 %s13, 1
      %s19 = ssub.s32 %s13, 2
      %s26 = sadd.s32 1, %s21
      %p27 = scmp.ge.s32.totalorder %s26, 1
      %s28 = scalar_select %p27, 0, %s26
      %s29 = sadd.s32 1, %s20
      %s30 = scalar_select %p27, %s29, %s20
      %p31 = scmp.ge.s32.totalorder %s30, 2
      %s32 = scalar_select %p31, 0, %s30
      %s33 = ssub.s32 %s20, %s32
      %s34 = ssub.s32 %s21, %s28
      %s35 = sor.u32 %s33, %s34
      %p36 = scmp.eq.s32.totalorder %s35, 0
      %s38 = sadd.s32 %s37, 1
      %s39 = scalar_select %p36, %s37, %s38
      %p42 = pneg %p36
      %p43 = scmp.eq.s32.totalorder %s13, 1
      %p44 = por %p42, %p43
      %p45 = scmp.ne.s32.totalorder %s37, %s40
      %p46 = scmp.eq.s32.totalorder %s13, 0
      %p47 = por %p45, %p46
      %p48 = scmp.ne.s32.totalorder %s37, %s40
      %p49 = scmp.eq.s32.totalorder %s18, 1
      %p50 = por %p48, %p49
      %p51 = scmp.ne.s32.totalorder %s40, %s41
      %p52 = scmp.eq.s32.totalorder %s18, 0
      %p53 = por %p51, %p52
      %p54 = scmp.ne.s32.totalorder %s40, %s41
      %p55 = scmp.eq.s32.totalorder %s19, 1
      %p56 = por %p54, %p55
      %p58 = scmp.ne.s32.totalorder %s41, %s57
      %p59 = scmp.eq.s32.totalorder %s19, 0
      %p60 = por %p58, %p59
      %s62 = sadd.s32 %s61, 1
      %p65 = scmp.eq.s32.totalorder %s13, 1
      %p66 = scmp.ne.s32.totalorder %s61, %s63
      %p67 = scmp.eq.s32.totalorder %s13, 0
      %p68 = por %p66, %p67
      %p69 = scmp.ne.s32.totalorder %s61, %s63
      %p70 = scmp.eq.s32.totalorder %s18, 1
      %p71 = por %p69, %p70
      %p72 = scmp.ne.s32.totalorder %s63, %s64
      %p73 = scmp.eq.s32.totalorder %s18, 0
      %p74 = por %p72, %p73
      %p75 = scmp.ne.s32.totalorder %s63, %s64
      %p76 = scmp.eq.s32.totalorder %s19, 1
      %p77 = por %p75, %p76
      %p79 = scmp.ne.s32.totalorder %s64, %s78
      %p80 = scmp.eq.s32.totalorder %s19, 0
      %p81 = por %p79, %p80
      %s82 = ssub.s32 %s20, %s32
      %s83 = ssub.s32 %s21, %s28
      %s84 = sor.u32 %s82, %s83
      %p85 = scmp.eq.s32.totalorder %s84, 0
      %s87 = sadd.s32 %s86, 1
      %s88 = scalar_select %p85, %s86, %s87
      %p91 = pneg %p85
      %p92 = scmp.eq.s32.totalorder %s13, 1
      %p93 = por %p91, %p92
      %p94 = scmp.ne.s32.totalorder %s86, %s89
      %p95 = scmp.eq.s32.totalorder %s13, 0
      %p96 = por %p94, %p95
      %p97 = scmp.ne.s32.totalorder %s86, %s89
      %p98 = scmp.eq.s32.totalorder %s18, 1
      %p99 = por %p97, %p98
      %p100 = scmp.ne.s32.totalorder %s89, %s90
      %p101 = scmp.eq.s32.totalorder %s18, 0
      %p102 = por %p100, %p101
      %p103 = scmp.ne.s32.totalorder %s89, %s90
      %p104 = scmp.eq.s32.totalorder %s19, 1
      %p105 = por %p103, %p104
      %p107 = scmp.ne.s32.totalorder %s90, %s106
      %p108 = scmp.eq.s32.totalorder %s19, 0
      %p109 = por %p107, %p108
      %s110 = ssub.s32 %s20, %s32
      %s111 = ssub.s32 %s21, %s28
      %s112 = sor.u32 %s110, %s111
      %p113 = scmp.eq.s32.totalorder %s112, 0
      %s115 = sadd.s32 %s114, 1
      %s116 = scalar_select %p113, %s114, %s115
      %p119 = pneg %p113
      %p120 = scmp.eq.s32.totalorder %s13, 1
      %p121 = por %p119, %p120
      %p122 = scmp.ne.s32.totalorder %s114, %s117
      %p123 = scmp.eq.s32.totalorder %s13, 0
      %p124 = por %p122, %p123
      %p125 = scmp.ne.s32.totalorder %s114, %s117
      %p126 = scmp.eq.s32.totalorder %s18, 1
      %p127 = por %p125, %p126
      %p128 = scmp.ne.s32.totalorder %s117, %s118
      %p129 = scmp.eq.s32.totalorder %s18, 0
      %p130 = por %p128, %p129
      %p131 = scmp.ne.s32.totalorder %s117, %s118
      %p132 = scmp.eq.s32.totalorder %s19, 1
      %p133 = por %p131, %p132
      %p135 = scmp.ne.s32.totalorder %s118, %s134
      %p136 = scmp.eq.s32.totalorder %s19, 0
      %p137 = por %p135, %p136
      %p138 = scmp.le.s32.totalorder 1, %s13
      %p139 = scmp.lt.s32.totalorder %s13, 3
      %p140 = pnand %p138, %p139
      %p141 = pneg %p140
      // Predicated region
      $region9: #{tpu_custom_call.1} parent=5 // pred_check
        _
      $region10: #{tpu_custom_call.1} parent=5 // pred_check_branch
        %143 = sbr.rel (%p140) target = $region12
      $region11: #{tpu_custom_call.1} parent=5 // pred_region
        %s144 = ssub.s32 %s13, 1
        // Predicated region
        $region13: #{tpu_custom_call.1} parent=11 // pred_check
          %p145 = pneg %p74
        $region14: #{tpu_custom_call.1} parent=11 // pred_check_branch
          %147 = sbr.rel (%p145) target = $region16
        $region15: #{tpu_custom_call.1} parent=11 // pred_region
          _
        $region16: #{tpu_custom_call.1} parent=11 // pred_fallthru
          _
      $region12: #{tpu_custom_call.1} parent=5 // pred_fallthru
        _
      %p148 = scmp.lt.s32.totalorder %s13, 2
      // Predicated region
      $region17: #{tpu_custom_call.1} parent=5 // pred_check
        %p149 = pneg %p148
      $region18: #{tpu_custom_call.1} parent=5 // pred_check_branch
        %151 = sbr.rel (%p149) target = $region20
      $region19: #{tpu_custom_call.1} parent=5 // pred_region
        // Predicated region
        $region21: #{tpu_custom_call.1} parent=19 // pred_check
          %p152 = pneg %p47
        $region22: #{tpu_custom_call.1} parent=19 // pred_check_branch
          %154 = sbr.rel (%p152) target = $region24
        $region23: #{tpu_custom_call.1} parent=19 // pred_region
          %s155 = sand.u32 %s37, 1
          %s156 = scalar_lea.sflag [#allocation3], %s155
          %s157 = sand.u32 %s37, 1
          %s158 = smul.addr %s157, 8
          %s159 = scalar_lea.vmem [#allocation2], %s158
          %s160 = smul.u32 2, %s21
          %162 = vsyncadd %s156, 0
          %s163 = smul.addr %s20, 2
          %s164 = sadd.s32 %s160, %s163
          %s165 = smul.addr %s164, 4
          %s166 = scalar_lea.hbm %s0, %s165
          %s168 = sshll.u32 %s166, 4
          %s169 = int_to_ptr.hbm [resolvable:$true] %s168
          %s170 = sshll.u32 %s159, 4
          %s171 = int_to_ptr.vmem [resolvable:$true] %s170
          %173 = dma.hbm_to_vmem [thread:$0]  %s169, 128, %s171, %s156
        $region24: #{tpu_custom_call.1} parent=19 // pred_fallthru
          _
      $region20: #{tpu_custom_call.1} parent=5 // pred_fallthru
        _
      %p174 = scmp.le.s32.totalorder 1, %s13
      %p175 = scmp.lt.s32.totalorder %s13, 3
      %p176 = pnand %p174, %p175
      %p177 = pneg %p176
      // Predicated region
      $region25: #{tpu_custom_call.1} parent=5 // pred_check
        _
      $region26: #{tpu_custom_call.1} parent=5 // pred_check_branch
        %179 = sbr.rel (%p176) target = $region28
      $region27: #{tpu_custom_call.1} parent=5 // pred_region
        %s180 = ssub.s32 %s13, 1
        %s181 = sand.u32 %s40, 1
        %s182 = scalar_lea.sflag [#allocation3], %s181
        %s183 = sand.u32 %s40, 1
        %s184 = smul.addr %s183, 8
        %s185 = scalar_lea.vmem [#allocation2], %s184
        // Predicated region
        $region29: #{tpu_custom_call.1} parent=27 // pred_check
          %p186 = pneg %p53
        $region30: #{tpu_custom_call.1} parent=27 // pred_check_branch
          %188 = sbr.rel (%p186) target = $region32
        $region31: #{tpu_custom_call.1} parent=27 // pred_region
          %190 = dma.done %s182, 128
        $region32: #{tpu_custom_call.1} parent=27 // pred_fallthru
          _
        %s191 = sand.u32 %s40, 1
        %s192 = scalar_lea.sflag [#allocation3], %s191
        %s193 = sand.u32 %s40, 1
        %s194 = smul.addr %s193, 8
        %s195 = scalar_lea.vmem [#allocation2], %s194
        %p196 = pneg %p53
        %p197 = pneg %p50
        %p198 = pneg %p74
        %p199 = pneg %p71
        %p200 = pneg %p102
        %p201 = pneg %p99
        %p202 = scmp.lt.s32.totalorder %s22, 1
        %s203 = scalar_select %p202, %s22, 1
        %p204 = scmp.lt.s32.totalorder %s23, 0
        %s205 = scalar_select %p204, %s23, 0
        %s206 = sadd.s32 %s205, %s203
        %s207 = smul.addr %s206, 8
        %s208 = scalar_lea.vmem %s2, %s207
        %p209 = pneg %p130
        %p210 = pneg %p127
        %p211 = scmp.lt.s32.totalorder %s22, 1
        %s212 = scalar_select %p211, %s22, 1
        %p213 = scmp.lt.s32.totalorder %s23, 0
        %s214 = scalar_select %p213, %s23, 0
        %s215 = sadd.s32 %s214, %s212
        %s216 = smul.addr %s215, 8
        %s217 = scalar_lea.vmem %s3, %s216
        %s218 = smul.u32 2, %s23
        %p219 = scmp.lt.s32.totalorder %s22, 1
        %s220 = scalar_select %p219, %s22, 1
        %p221 = scmp.lt.s32.totalorder %s23, 0
        %s222 = scalar_select %p221, %s23, 0
        %s223 = sadd.s32 %s222, %s220
        %s224 = smul.addr %s223, 8
        %s225 = scalar_lea.vmem %s2, %s224
        %p226 = scmp.lt.s32.totalorder %s22, 1
        %s227 = scalar_select %p226, %s22, 1
        %p228 = scmp.lt.s32.totalorder %s23, 0
        %s229 = scalar_select %p228, %s23, 0
        %s230 = sadd.s32 %s229, %s227
        %s231 = smul.addr %s230, 8
        %s232 = scalar_lea.vmem %s3, %s231
        %v233 = vld [vmem:[%s1] sm:$0xff]
        %v234 = vld [vmem:[%s185] sm:$0xff]
        %236 = vst [vmem:[#allocation1] ss:$2 sm:$0xff] %v234
        %v237 = vld.sshfl [vmem:[#allocation1] sm:$0xff pattern:$0x75316420]
        %v238 = vld.sshfl [vmem:[#allocation1 + $0x8] sm:$0xff pattern:$0x75316420]
        %vm239 = vcmask 31744
        %v241 = vsel %vm239, %v233, 0
        %vm243 = vcmask 1043456
        %v244 = vsel %vm243, %v237, 0
        %v246 = vsel %vm243, %v238, 0
        %248 = vmatpush.msra.mxu0 0.0
        %249 = vmatpush.msra.mxu0 0.0
        %250 = vmatpush.msra.mxu0 0.0
        %251 = vmatpush.msra.mxu0 0.0
        %252 = vmatpush.msra.mxu0 0.0
        %253 = vmatpush.msra.mxu0 0.0
        %254 = vmatpush.msra.mxu0 0.0
        %255 = vmatpush.msra.mxu0 0.0
        %256 = vmatpush.msra.mxu0 0.0
        %257 = vmatpush.msra.mxu0 0.0
        %258 = vmatpush.msra.mxu0 0.0
        %259 = vmatpush.msra.mxu0 0.0
        %260 = vmatpush.msra.mxu0 0.0
        %261 = vmatpush.msra.mxu0 0.0
        %262 = vmatpush.msra.mxu0 0.0
        %263 = vmatpush.msra.mxu0 %v244
        %264 = vmatmul.f32.gmra.mxu0 %v241
        %v265 = vpop.f32.mrf.mxu0
        %v266 = vadd.f32 0.0, %v265
        %267 = vdwg.mxu0
        %268 = vmatpush.msra.mxu0 0.0
        %269 = vmatpush.msra.mxu0 0.0
        %270 = vmatpush.msra.mxu0 0.0
        %271 = vmatpush.msra.mxu0 0.0
        %272 = vmatpush.msra.mxu0 0.0
        %273 = vmatpush.msra.mxu0 0.0
        %274 = vmatpush.msra.mxu0 0.0
        %275 = vmatpush.msra.mxu0 0.0
        %276 = vmatpush.msra.mxu0 0.0
        %277 = vmatpush.msra.mxu0 0.0
        %278 = vmatpush.msra.mxu0 0.0
        %279 = vmatpush.msra.mxu0 0.0
        %280 = vmatpush.msra.mxu0 0.0
        %281 = vmatpush.msra.mxu0 0.0
        %282 = vmatpush.msra.mxu0 0.0
        %283 = vmatpush.msra.mxu0 %v246
        %284 = vmatmul.f32.gmra.mxu0 %v241
        %v285 = vpop.f32.mrf.mxu0
        %v286 = vadd.f32 0.0, %v285
        %287 = vdwg.mxu0
        %v288 = vadd.f32 %v266, %v286
        %289 = vadd.xlane.f32.xlu0 %v288
        %v290 = vpop.xlane.xlu0 %289
        %vm291 = vcmask 7168
        %292 = vst.msk [vmem:[%s225] sm:$0xff] %vm291, %v290
        %v293 = vmul.f32 %v266, %v266
        %v294 = vmul.f32 %v286, %v286
        %v295 = vadd.f32 %v293, %v294
        %296 = vadd.xlane.f32.xlu0 %v295
        %v297 = vpop.xlane.xlu0 %296
        %298 = vst.msk [vmem:[%s232] sm:$0xff] %vm291, %v297
        %p299 = scmp.lt.s32.totalorder %s22, 1
        %s300 = scalar_select %p299, %s22, 1
        %p301 = scmp.lt.s32.totalorder %s23, 0
        %s302 = scalar_select %p301, %s23, 0
        %s303 = sadd.s32 %s302, %s300
        %s304 = smul.addr %s303, 8
        %s305 = scalar_lea.vmem %s2, %s304
        %p306 = scmp.lt.s32.totalorder %s22, 1
        %s307 = scalar_select %p306, %s22, 1
        %p308 = scmp.lt.s32.totalorder %s23, 0
        %s309 = scalar_select %p308, %s23, 0
        %s310 = sadd.s32 %s309, %s307
        %s311 = smul.addr %s310, 8
        %s312 = scalar_lea.vmem %s3, %s311
        // Predicated region
        $region33: #{tpu_custom_call.1} parent=27 // pred_check
          %p313 = pneg %p99
        $region34: #{tpu_custom_call.1} parent=27 // pred_check_branch
          %315 = sbr.rel (%p313) target = $region36
        $region35: #{tpu_custom_call.1} parent=27 // pred_region
          _
        $region36: #{tpu_custom_call.1} parent=27 // pred_fallthru
          _
        // Predicated region
        $region37: #{tpu_custom_call.1} parent=27 // pred_check
          %p316 = pneg %p127
        $region38: #{tpu_custom_call.1} parent=27 // pred_check_branch
          %318 = sbr.rel (%p316) target = $region40
        $region39: #{tpu_custom_call.1} parent=27 // pred_region
          _
        $region40: #{tpu_custom_call.1} parent=27 // pred_fallthru
          _
      $region28: #{tpu_custom_call.1} parent=5 // pred_fallthru
        _
      %p319 = scmp.le.s32.totalorder 2, %s13
      // Predicated region
      $region41: #{tpu_custom_call.1} parent=5 // pred_check
        %p320 = pneg %p319
      $region42: #{tpu_custom_call.1} parent=5 // pred_check_branch
        %322 = sbr.rel (%p320) target = $region44
      $region43: #{tpu_custom_call.1} parent=5 // pred_region
        %s323 = ssub.s32 %s13, 2
        // Predicated region
        $region45: #{tpu_custom_call.1} parent=43 // pred_check
          %p324 = pneg %p105
        $region46: #{tpu_custom_call.1} parent=43 // pred_check_branch
          %326 = sbr.rel (%p324) target = $region48
        $region47: #{tpu_custom_call.1} parent=43 // pred_region
          %p327 = scmp.lt.s32.totalorder %s24, 1
          %s328 = scalar_select %p327, %s24, 1
          %p329 = scmp.lt.s32.totalorder %s25, 0
          %s330 = scalar_select %p329, %s25, 0
          %s331 = sadd.s32 %s330, %s328
          %s332 = smul.addr %s331, 8
          %s333 = scalar_lea.vmem %s2, %s332
        $region48: #{tpu_custom_call.1} parent=43 // pred_fallthru
          _
        // Predicated region
        $region49: #{tpu_custom_call.1} parent=43 // pred_check
          %p334 = pneg %p133
        $region50: #{tpu_custom_call.1} parent=43 // pred_check_branch
          %336 = sbr.rel (%p334) target = $region52
        $region51: #{tpu_custom_call.1} parent=43 // pred_region
          %p337 = scmp.lt.s32.totalorder %s24, 1
          %s338 = scalar_select %p337, %s24, 1
          %p339 = scmp.lt.s32.totalorder %s25, 0
          %s340 = scalar_select %p339, %s25, 0
          %s341 = sadd.s32 %s340, %s338
          %s342 = smul.addr %s341, 8
          %s343 = scalar_lea.vmem %s3, %s342
        $region52: #{tpu_custom_call.1} parent=43 // pred_fallthru
          _
      $region44: #{tpu_custom_call.1} parent=5 // pred_fallthru
        _
    $region6: #{tpu_custom_call.1} parent=1 // loop_footer
      %s17 = sadd.s32 1, %s13
    $region7: #{tpu_custom_call.1} parent=1 // loop_footer_branch
      %12 = sbr.rel target = $region3
    $region8: #{tpu_custom_call.1} parent=1 // loop_exit
      _
    %344 = vsyncpa [#allocation3], 1
    %s345 = scalar_lea.sflag [#allocation3], 1
    %346 = vsyncpa %s345, 1

</llo_original>
